<compile_context>
chip_gen: v7x
topology: tpu7x:2x2x1
jax: 0.10.0
libtpu: 0.0.40
codegen_flags: <defaults>
</compile_context>

<pallas_src>
from functools import partial

import jax
import jax.numpy as jnp
from jax.experimental import pallas as pl
from jax.experimental.pallas import tpu as pltpu


def critic_kernel(x_ref, w1_ref, b1_ref, w2_ref, b2_ref,
                  w3_ref, b3_ref, w4_ref, b4_ref, out_ref):
    # Three MXU matmuls (bf16 operands, f32 accumulate) with fused bias+ReLU
    # on the VPU, then a VPU multiply + lane reduction for the 128 -> 1 head.
    h1 = jnp.dot(x_ref[...], w1_ref[...],
                 preferred_element_type=jnp.float32) + b1_ref[...]
    h1 = jnp.maximum(h1, 0.0)
    h2 = jnp.dot(h1.astype(jnp.bfloat16), w2_ref[...],
                 preferred_element_type=jnp.float32) + b2_ref[...]
    h2 = jnp.maximum(h2, 0.0)
    h3 = jnp.dot(h2.astype(jnp.bfloat16), w3_ref[...],
                 preferred_element_type=jnp.float32) + b3_ref[...]
    h3 = jnp.maximum(h3, 0.0)
    # 128 -> 1 projection: multiply by the (1, 128) weight row, reduce over
    # the lane axis, then store the per-tile values as a lane-dense (1, TB)
    # row (single small relayout instead of TB/8 masked column stores).
    v = jnp.sum(h3 * w4_ref[...], axis=-1)            # (TB,)
    out_ref[...] = v[None, :] + b4_ref[...]            # (1, TB)


@partial(jax.jit, static_argnames=("block_b",))
def critic_forward(state, params, *, block_b=512):
    """state: [B, D] float32 -> value: [B, 1] float32."""
    w1, b1, w2, b2, w3, b3, w4, b4 = params
    B, D = state.shape
    F1, F2, F3 = w1.shape[1], w2.shape[1], w3.shape[1]

    # bf16 operands into the MXU: weights cast once, state cast once (halves
    # the per-tile input DMA).  Biases and the 1-wide head stay f32.
    xb = state.astype(jnp.bfloat16)
    w1b = w1.astype(jnp.bfloat16)
    w2b = w2.astype(jnp.bfloat16)
    w3b = w3.astype(jnp.bfloat16)
    w4_row = w4.reshape(1, F3).astype(jnp.float32)     # (1, 128)

    # Batch tiling: one block if B fits, else 128-aligned tiles of block_b
    # rows; the ragged last block is masked by Pallas (no input padding).
    if B <= block_b:
        TB = B
        num_tiles = 1
    else:
        TB = max(128, (block_b // 128) * 128)
        num_tiles = pl.cdiv(B, TB)
    Bp = num_tiles * TB                                 # lane-dense out width

    resident = lambda a: pl.BlockSpec(a.shape, lambda i: (0,) * a.ndim)

    flops = 2 * Bp * (D * F1 + F1 * F2 + F2 * F3 + F3)
    bytes_accessed = (
        Bp * D * 2 + Bp * 4                              # bf16 state in, f32 value out
        + (D * F1 + F1 * F2 + F2 * F3) * 2 + F3 * 4      # weights (bf16 + f32 head)
        + (F1 + F2 + F3 + 1) * 4                         # biases
    )

    out_row = pl.pallas_call(
        critic_kernel,
        out_shape=jax.ShapeDtypeStruct((1, Bp), jnp.float32),
        grid=(num_tiles,),
        in_specs=[
            pl.BlockSpec((TB, D), lambda i: (i, 0)),     # state: batch-tiled
            resident(w1b), resident(b1),                 # weights/biases:
            resident(w2b), resident(b2),                 #   VMEM-resident,
            resident(w3b), resident(b3),                 #   DMA'd once
            resident(w4_row), resident(b4),
        ],
        out_specs=pl.BlockSpec((1, TB), lambda i: (0, i)),  # lane-dense row
        compiler_params=pltpu.CompilerParams(
            dimension_semantics=("parallel",)),          # megacore-friendly
        cost_estimate=pl.CostEstimate(
            flops=flops, transcendentals=0, bytes_accessed=bytes_accessed),
    )(xb, w1b, b1, w2b, b2, w3b, b3, w4_row, b4)

    # Drop the (Bp - B) tail written from the masked ragged block.
    return out_row[0, :B][:, None]


def init_params(key, input_dim, fc1=512, fc2=256, fc3=128):
    """Deterministic init mimicking nn.Linear default (U[-1/sqrt(fan_in), ...])."""
    dims = [(input_dim, fc1), (fc1, fc2), (fc2, fc3), (fc3, 1)]
    params = []
    keys = jax.random.split(key, 2 * len(dims))
    for i, (fan_in, fan_out) in enumerate(dims):
        bound = 1.0 / (fan_in ** 0.5)
        w = jax.random.uniform(keys[2 * i], (fan_in, fan_out),
                               jnp.float32, -bound, bound)
        b = jax.random.uniform(keys[2 * i + 1], (1, fan_out),
                               jnp.float32, -bound, bound)
        params += [w, b]
    return tuple(params)


def critic_reference(state, params):
    w1, b1, w2, b2, w3, b3, w4, b4 = params
    h = jnp.maximum(state @ w1 + b1, 0.0)
    h = jnp.maximum(h @ w2 + b2, 0.0)
    h = jnp.maximum(h @ w3 + b3, 0.0)
    return h @ w4 + b4


if __name__ == "__main__":
    key = jax.random.PRNGKey(0)
    k_param, k_state = jax.random.split(key)

    batch, input_dim = 8, 32
    params = init_params(k_param, input_dim)
    state = jax.random.normal(k_state, (batch, input_dim), jnp.float32)

    value = jax.block_until_ready(critic_forward(state, params))
    ref = critic_reference(state, params)
    assert value.shape == (batch, 1)
    # bf16 MXU operands with f32 accumulation -> loosened tolerance vs f32 ref.
    assert jnp.allclose(value, ref, atol=2e-2, rtol=2e-2)

    # Multi-tile, ragged batch exercising cdiv grid + masked last block.
    big_state = jax.random.normal(k_state, (515, input_dim), jnp.float32)
    big_value = jax.block_until_ready(critic_forward(big_state, params))
    assert big_value.shape == (515, 1)
    assert jnp.allclose(big_value, critic_reference(big_state, params),
                        atol=2e-2, rtol=2e-2)

    print("KERNEL_OK")
</pallas_src>

<mosaic_0001>
module attributes {stable_mosaic.version = 11 : i64} {
  func.func @critic_kernel(%arg0: i32, %arg1: memref<8x32xbf16, #tpu.memory_space<vmem>>, %arg2: memref<32x512xbf16, #tpu.memory_space<vmem>>, %arg3: memref<1x512xf32, #tpu.memory_space<vmem>>, %arg4: memref<512x256xbf16, #tpu.memory_space<vmem>>, %arg5: memref<1x256xf32, #tpu.memory_space<vmem>>, %arg6: memref<256x128xbf16, #tpu.memory_space<vmem>>, %arg7: memref<1x128xf32, #tpu.memory_space<vmem>>, %arg8: memref<1x128xf32, #tpu.memory_space<vmem>>, %arg9: memref<1x1xf32, #tpu.memory_space<vmem>>, %arg10: memref<1x8xf32, #tpu.memory_space<vmem>>) attributes {dimension_semantics = [#tpu.dimension_semantics<parallel>], iteration_bounds = array<i64: 1>, scalar_prefetch = 0 : i64, scratch_operands = 0 : i64, tpu.core_type = #tpu.core_type<tc>, window_params = [{transform_indices = @transform_0, window_bounds = array<i64: 8, 32>}, {pipeline_mode = #tpu.pipeline_mode<synchronous>, transform_indices = @transform_1, window_bounds = array<i64: 32, 512>}, {pipeline_mode = #tpu.pipeline_mode<synchronous>, transform_indices = @transform_2, window_bounds = array<i64: 1, 512>}, {pipeline_mode = #tpu.pipeline_mode<synchronous>, transform_indices = @transform_3, window_bounds = array<i64: 512, 256>}, {pipeline_mode = #tpu.pipeline_mode<synchronous>, transform_indices = @transform_4, window_bounds = array<i64: 1, 256>}, {pipeline_mode = #tpu.pipeline_mode<synchronous>, transform_indices = @transform_5, window_bounds = array<i64: 256, 128>}, {pipeline_mode = #tpu.pipeline_mode<synchronous>, transform_indices = @transform_6, window_bounds = array<i64: 1, 128>}, {pipeline_mode = #tpu.pipeline_mode<synchronous>, transform_indices = @transform_7, window_bounds = array<i64: 1, 128>}, {pipeline_mode = #tpu.pipeline_mode<synchronous>, transform_indices = @transform_8, window_bounds = array<i64: 1, 1>}, {transform_indices = @transform_9, window_bounds = array<i64: 1, 8>}]} {
    %c0 = arith.constant 0 : index
    %c0_0 = arith.constant 0 : index
    %0 = vector.load %arg1[%c0, %c0_0] : memref<8x32xbf16, #tpu.memory_space<vmem>>, vector<8x32xbf16>
    %c0_1 = arith.constant 0 : index
    %c0_2 = arith.constant 0 : index
    %1 = vector.load %arg2[%c0_1, %c0_2] : memref<32x512xbf16, #tpu.memory_space<vmem>>, vector<32x512xbf16>
    %cst = arith.constant dense<0.000000e+00> : vector<8x512xf32>
    %2 = tpu.matmul %0, %1, %cst {dimension_numbers = #tpu.dot_dimension_numbers<[1], [0], [0], [1], [0, 0, 1, 1], [], []>} : vector<8x32xbf16>, vector<32x512xbf16>, vector<8x512xf32> -> vector<8x512xf32>
    %c0_3 = arith.constant 0 : index
    %c0_4 = arith.constant 0 : index
    %3 = vector.load %arg3[%c0_3, %c0_4] : memref<1x512xf32, #tpu.memory_space<vmem>>, vector<1x512xf32>
    %4 = vector.broadcast %3 : vector<1x512xf32> to vector<8x512xf32>
    %5 = arith.addf %2, %4 : vector<8x512xf32>
    %cst_5 = arith.constant 0.000000e+00 : f32
    %6 = vector.broadcast %cst_5 : f32 to vector<8x512xf32>
    %7 = arith.maximumf %5, %6 : vector<8x512xf32>
    %8 = arith.truncf %7 : vector<8x512xf32> to vector<8x512xbf16>
    %c0_6 = arith.constant 0 : index
    %c0_7 = arith.constant 0 : index
    %9 = vector.load %arg4[%c0_6, %c0_7] : memref<512x256xbf16, #tpu.memory_space<vmem>>, vector<512x256xbf16>
    %cst_8 = arith.constant dense<0.000000e+00> : vector<8x256xf32>
    %10 = tpu.matmul %8, %9, %cst_8 {dimension_numbers = #tpu.dot_dimension_numbers<[1], [0], [0], [1], [0, 0, 1, 1], [], []>} : vector<8x512xbf16>, vector<512x256xbf16>, vector<8x256xf32> -> vector<8x256xf32>
    %c0_9 = arith.constant 0 : index
    %c0_10 = arith.constant 0 : index
    %11 = vector.load %arg5[%c0_9, %c0_10] : memref<1x256xf32, #tpu.memory_space<vmem>>, vector<1x256xf32>
    %12 = vector.broadcast %11 : vector<1x256xf32> to vector<8x256xf32>
    %13 = arith.addf %10, %12 : vector<8x256xf32>
    %cst_11 = arith.constant 0.000000e+00 : f32
    %14 = vector.broadcast %cst_11 : f32 to vector<8x256xf32>
    %15 = arith.maximumf %13, %14 : vector<8x256xf32>
    %16 = arith.truncf %15 : vector<8x256xf32> to vector<8x256xbf16>
    %c0_12 = arith.constant 0 : index
    %c0_13 = arith.constant 0 : index
    %17 = vector.load %arg6[%c0_12, %c0_13] : memref<256x128xbf16, #tpu.memory_space<vmem>>, vector<256x128xbf16>
    %cst_14 = arith.constant dense<0.000000e+00> : vector<8x128xf32>
    %18 = tpu.matmul %16, %17, %cst_14 {dimension_numbers = #tpu.dot_dimension_numbers<[1], [0], [0], [1], [0, 0, 1, 1], [], []>} : vector<8x256xbf16>, vector<256x128xbf16>, vector<8x128xf32> -> vector<8x128xf32>
    %c0_15 = arith.constant 0 : index
    %c0_16 = arith.constant 0 : index
    %19 = vector.load %arg7[%c0_15, %c0_16] : memref<1x128xf32, #tpu.memory_space<vmem>>, vector<1x128xf32>
    %20 = vector.broadcast %19 : vector<1x128xf32> to vector<8x128xf32>
    %21 = arith.addf %18, %20 : vector<8x128xf32>
    %cst_17 = arith.constant 0.000000e+00 : f32
    %22 = vector.broadcast %cst_17 : f32 to vector<8x128xf32>
    %23 = arith.maximumf %21, %22 : vector<8x128xf32>
    %c0_18 = arith.constant 0 : index
    %c0_19 = arith.constant 0 : index
    %24 = vector.load %arg8[%c0_18, %c0_19] : memref<1x128xf32, #tpu.memory_space<vmem>>, vector<1x128xf32>
    %25 = vector.broadcast %24 : vector<1x128xf32> to vector<8x128xf32>
    %26 = arith.mulf %23, %25 : vector<8x128xf32>
    %cst_20 = arith.constant dense<0.000000e+00> : vector<8xf32>
    %27 = vector.multi_reduction <add>, %26, %cst_20 [1] : vector<8x128xf32> to vector<8xf32>
    %28 = vector.shape_cast %27 : vector<8xf32> to vector<1x8xf32>
    %c0_21 = arith.constant 0 : index
    %c0_22 = arith.constant 0 : index
    %29 = vector.load %arg9[%c0_21, %c0_22] : memref<1x1xf32, #tpu.memory_space<vmem>>, vector<1x1xf32>
    %30 = vector.broadcast %29 : vector<1x1xf32> to vector<1x8xf32>
    %31 = arith.addf %28, %30 : vector<1x8xf32>
    %c0_23 = arith.constant 0 : index
    %c0_24 = arith.constant 0 : index
    %32 = vector.load %arg10[%c0_23, %c0_24] : memref<1x8xf32, #tpu.memory_space<vmem>>, vector<1x8xf32>
    tpu.vector_store %arg10[%c0_23, %c0_24], %31 {strides = array<i32>} : memref<1x8xf32, #tpu.memory_space<vmem>>, vector<1x8xf32>,
    return
  }
  func.func @transform_0(%arg0: i32) -> (i32, i32) {
    %c0_i32 = arith.constant 0 : i32
    %c0_i32_0 = arith.constant 0 : i32
    return %arg0, %c0_i32 : i32, i32
  }
  func.func @transform_1(%arg0: i32) -> (i32, i32) {
    %c0_i32 = arith.constant 0 : i32
    %c0_i32_0 = arith.constant 0 : i32
    %c0_i32_1 = arith.constant 0 : i32
    return %c0_i32, %c0_i32_0 : i32, i32
  }
  func.func @transform_2(%arg0: i32) -> (i32, i32) {
    %c0_i32 = arith.constant 0 : i32
    %c0_i32_0 = arith.constant 0 : i32
    %c0_i32_1 = arith.constant 0 : i32
    return %c0_i32, %c0_i32_0 : i32, i32
  }
  func.func @transform_3(%arg0: i32) -> (i32, i32) {
    %c0_i32 = arith.constant 0 : i32
    %c0_i32_0 = arith.constant 0 : i32
    %c0_i32_1 = arith.constant 0 : i32
    return %c0_i32, %c0_i32_0 : i32, i32
  }
  func.func @transform_4(%arg0: i32) -> (i32, i32) {
    %c0_i32 = arith.constant 0 : i32
    %c0_i32_0 = arith.constant 0 : i32
    %c0_i32_1 = arith.constant 0 : i32
    return %c0_i32, %c0_i32_0 : i32, i32
  }
  func.func @transform_5(%arg0: i32) -> (i32, i32) {
    %c0_i32 = arith.constant 0 : i32
    %c0_i32_0 = arith.constant 0 : i32
    %c0_i32_1 = arith.constant 0 : i32
    return %c0_i32, %c0_i32_0 : i32, i32
  }
  func.func @transform_6(%arg0: i32) -> (i32, i32) {
    %c0_i32 = arith.constant 0 : i32
    %c0_i32_0 = arith.constant 0 : i32
    %c0_i32_1 = arith.constant 0 : i32
    return %c0_i32, %c0_i32_0 : i32, i32
  }
  func.func @transform_7(%arg0: i32) -> (i32, i32) {
    %c0_i32 = arith.constant 0 : i32
    %c0_i32_0 = arith.constant 0 : i32
    %c0_i32_1 = arith.constant 0 : i32
    return %c0_i32, %c0_i32_0 : i32, i32
  }
  func.func @transform_8(%arg0: i32) -> (i32, i32) {
    %c0_i32 = arith.constant 0 : i32
    %c0_i32_0 = arith.constant 0 : i32
    %c0_i32_1 = arith.constant 0 : i32
    return %c0_i32, %c0_i32_0 : i32, i32
  }
  func.func @transform_9(%arg0: i32) -> (i32, i32) {
    %c0_i32 = arith.constant 0 : i32
    %c0_i32_0 = arith.constant 0 : i32
    return %c0_i32, %arg0 : i32, i32
  }
}

</mosaic_0001>

<llo_original>
// kernel: critic_forward.1
$region0: #{critic_forward.1}
  #allocation0 [shape = 'u32[]', space=smem, size = 0x4, offset = 0x4, fixed_abs, tag = 'smem constant byte address 0x4 - core index']
  #allocation1 [shape = 'u32[144,128]{1,0:T(1,128)}', space=vmem, size = 0x12000, scoped, tag = 'internal scratch']
  #allocation2 [shape = 'f32[1,1]{1,0:T(1,128)S(1)}', space=vmem, size = 0x200, scoped, tag = 'scoped memory for critic_forward.1']
  %s0 = inlined_call_operand.vmem [shape: bf16[8,32], index: 0, kind: input, shape index: {}]
  %s1 = inlined_call_operand.vmem [shape: bf16[32,512], index: 1, kind: input, shape index: {}]
  %s2 = inlined_call_operand.vmem [shape: f32[1,512], index: 2, kind: input, shape index: {}]
  %s3 = inlined_call_operand.vmem [shape: bf16[512,256], index: 3, kind: input, shape index: {}]
  %s4 = inlined_call_operand.vmem [shape: f32[1,256], index: 4, kind: input, shape index: {}]
  %s5 = inlined_call_operand.vmem [shape: bf16[256,128], index: 5, kind: input, shape index: {}]
  %s6 = inlined_call_operand.vmem [shape: f32[1,128], index: 6, kind: input, shape index: {}]
  %s7 = inlined_call_operand.vmem [shape: f32[1,128], index: 7, kind: input, shape index: {}]
  %s8 = inlined_call_operand.<no memory space> [shape: f32[1,1], index: 8, kind: input, shape index: {}]
  %s9 = inlined_call_operand.hbm [shape: f32[1,8], index: 9, kind: output, shape index: {}]
  %s10 = sld [smem:[#allocation0]]
  $region46: #{critic_forward.1} parent=0
    _
  %s12 = ssub.s32 1, %s10
  %s13 = scalar_select 0, %s12, %s10
  %v14 = vstv %s8
  %15 = vst [vmem:[#allocation2] sm:$0x1] %v14
  $region1: #{critic_forward.1} parent=0
    #allocation3 [shape = 'u8[512]{0}', space=vmem, size = 0x400, scoped, tag = 'output window, operand 0, single buffered']
    #allocation4 [shape = 's32[1]{0}', space=sflag, size = 0x4, scoped, tag = 'scoped memory for critic_forward.1']
    %16 = vsyncpa [#allocation4], 0
    // Predicated region
    $region2: #{critic_forward.1} parent=1 // pred_check
      _
    $region3: #{critic_forward.1} parent=1 // pred_check_branch
      %18 = sbr.rel (0) target = $region5
    $region4: #{critic_forward.1} parent=1 // pred_region
      _
    $region5: #{critic_forward.1} parent=1 // pred_fallthru
      _
    // Predicated region
    $region6: #{critic_forward.1} parent=1 // pred_check
      _
    $region7: #{critic_forward.1} parent=1 // pred_check_branch
      %20 = sbr.rel (0) target = $region9
    $region8: #{critic_forward.1} parent=1 // pred_region
      _
    $region9: #{critic_forward.1} parent=1 // pred_fallthru
      _
    // Predicated region
    $region10: #{critic_forward.1} parent=1 // pred_check
      _
    $region11: #{critic_forward.1} parent=1 // pred_check_branch
      %22 = sbr.rel (0) target = $region13
    $region12: #{critic_forward.1} parent=1 // pred_region
      _
    $region13: #{critic_forward.1} parent=1 // pred_fallthru
      _
    // Predicated region
    $region14: #{critic_forward.1} parent=1 // pred_check
      _
    $region15: #{critic_forward.1} parent=1 // pred_check_branch
      %24 = sbr.rel (0) target = $region17
    $region16: #{critic_forward.1} parent=1 // pred_region
      _
    $region17: #{critic_forward.1} parent=1 // pred_fallthru
      _
    // Predicated region
    $region18: #{critic_forward.1} parent=1 // pred_check
      _
    $region19: #{critic_forward.1} parent=1 // pred_check_branch
      %26 = sbr.rel (0) target = $region21
    $region20: #{critic_forward.1} parent=1 // pred_region
      _
    $region21: #{critic_forward.1} parent=1 // pred_fallthru
      _
    // Predicated region
    $region22: #{critic_forward.1} parent=1 // pred_check
      _
    $region23: #{critic_forward.1} parent=1 // pred_check_branch
      %28 = sbr.rel (0) target = $region25
    $region24: #{critic_forward.1} parent=1 // pred_region
      _
    $region25: #{critic_forward.1} parent=1 // pred_fallthru
      _
    // Predicated region
    $region26: #{critic_forward.1} parent=1 // pred_check
      _
    $region27: #{critic_forward.1} parent=1 // pred_check_branch
      %30 = sbr.rel (0) target = $region29
    $region28: #{critic_forward.1} parent=1 // pred_region
      _
    $region29: #{critic_forward.1} parent=1 // pred_fallthru
      _
    // Predicated region
    $region30: #{critic_forward.1} parent=1 // pred_check
      _
    $region31: #{critic_forward.1} parent=1 // pred_check_branch
      %32 = sbr.rel (0) target = $region33
    $region32: #{critic_forward.1} parent=1 // pred_region
      _
    $region33: #{critic_forward.1} parent=1 // pred_fallthru
      _
    // Predicated region
    $region34: #{critic_forward.1} parent=1 // pred_check
      _
    $region35: #{critic_forward.1} parent=1 // pred_check_branch
      %34 = sbr.rel (0) target = $region37
    $region36: #{critic_forward.1} parent=1 // pred_region
      _
    $region37: #{critic_forward.1} parent=1 // pred_fallthru
      _
    %v36 = vld [vmem:[%s0] sm:$0xf]
    %v37 = vld [vmem:[%s1] sm:$0xff]
    %v38 = vld [vmem:[%s1 + $0x8] sm:$0xff]
    %v39 = vld [vmem:[%s1 + $0x10] sm:$0xff]
    %v40 = vld [vmem:[%s1 + $0x18] sm:$0xff]
    %v41 = vld [vmem:[%s1 + $0x20] sm:$0xff]
    %v42 = vld [vmem:[%s1 + $0x28] sm:$0xff]
    %v43 = vld [vmem:[%s1 + $0x30] sm:$0xff]
    %v44 = vld [vmem:[%s1 + $0x38] sm:$0xff]
    %v45 = vld [vmem:[%s2] sm:$0xf]
    %v47 = vlaneseq
    %v48 = vshrl.u32 %v47, 7
    %v49 = vsub.s32 0, %v48
    %v50 = vrot.slane %v45, %v49
    %v51 = vlaneseq
    %v52 = vshrl.u32 %v51, 7
    %v53 = vsub.s32 1, %v52
    %v54 = vrot.slane %v45, %v53
    %v55 = vlaneseq
    %v56 = vshrl.u32 %v55, 7
    %v57 = vsub.s32 2, %v56
    %v58 = vrot.slane %v45, %v57
    %v59 = vlaneseq
    %v60 = vshrl.u32 %v59, 7
    %v61 = vsub.s32 3, %v60
    %v62 = vrot.slane %v45, %v61
    %v75 = vunpack.c.l.b16 %v37
    %v76 = vunpack.c.h.b16 %v37
    %v77 = vunpack.c.l.b16 %v38
    %v78 = vunpack.c.h.b16 %v38
    %v79 = vunpack.c.l.b16 %v39
    %v80 = vunpack.c.h.b16 %v39
    %v81 = vunpack.c.l.b16 %v40
    %v82 = vunpack.c.h.b16 %v40
    %v83 = vunpack.c.l.b16 %v41
    %v84 = vunpack.c.h.b16 %v41
    %v85 = vunpack.c.l.b16 %v42
    %v86 = vunpack.c.h.b16 %v42
    %v87 = vunpack.c.l.b16 %v43
    %v88 = vunpack.c.h.b16 %v43
    %v89 = vunpack.c.l.b16 %v44
    %v90 = vunpack.c.h.b16 %v44
    %v91 = vpack.c.b16 %v79, %v75
    %v92 = vpack.c.b16 %v80, %v76
    %v93 = vpack.c.b16 %v81, %v77
    %v94 = vpack.c.b16 %v82, %v78
    %v95 = vpack.c.b16 %v87, %v83
    %v96 = vpack.c.b16 %v88, %v84
    %v97 = vpack.c.b16 %v89, %v85
    %v98 = vpack.c.b16 %v90, %v86
    %vm107 = vcmask 261120
    %v109 = vsel %vm107, %v36, 0
    %111 = vmatprep.subr.bf16.mxu0 %v92
    %112 = vmatpush1.bf16.msra.mxu0 %v91
    %113 = vmatprep.subr.bf16.mxu0 %v96
    %114 = vmatpush1.bf16.msra.mxu0 %v95
    %115 = vmatprep.subr.bf16.mxu0 0
    %116 = vmatpush1.bf16.msra.mxu0 0
    %117 = vmatprep.subr.bf16.mxu0 0
    %118 = vmatpush1.bf16.msra.mxu0 0
    %119 = vmatprep.subr.bf16.mxu0 0
    %120 = vmatpush1.bf16.msra.mxu0 0
    %121 = vmatprep.subr.bf16.mxu0 0
    %122 = vmatpush1.bf16.msra.mxu0 0
    %123 = vmatprep.subr.bf16.mxu0 0
    %124 = vmatpush1.bf16.msra.mxu0 0
    %125 = vmatprep.subr.bf16.mxu0 0
    %126 = vmatpush1.bf16.msra.mxu0 0
    %127 = vmatprep.subr.bf16.mxu0 0
    %128 = vmatpush1.bf16.msra.mxu0 0
    %129 = vmatprep.subr.bf16.mxu0 0
    %130 = vmatpush1.bf16.msra.mxu0 0
    %131 = vmatprep.subr.bf16.mxu0 0
    %132 = vmatpush1.bf16.msra.mxu0 0
    %133 = vmatprep.subr.bf16.mxu0 0
    %134 = vmatpush1.bf16.msra.mxu0 0
    %135 = vmatprep.subr.bf16.mxu0 0
    %136 = vmatpush1.bf16.msra.mxu0 0
    %137 = vmatprep.subr.bf16.mxu0 0
    %138 = vmatpush1.bf16.msra.mxu0 0
    %139 = vmatprep.subr.bf16.mxu0 0
    %140 = vmatpush1.bf16.msra.mxu0 0
    %141 = vmatprep.subr.bf16.mxu0 0
    %142 = vmatpush1.bf16.msra.mxu0 0
    %143 = vmatprep.mubr.bf16.mxu0 0
    %144 = vmatmul.mubr.bf16.gmra.mrb[0].mxu0 %v109
    %v145 = vpop.f32.mrb[0].mxu0
    %v146 = vadd.f32 %v50, %v145
    %v147 = vpop.f32.mrb[0].mxu0
    %v148 = vadd.f32 %v54, %v147
    %v149 = vpop.f32.mrb[0].mxu0
    %v150 = vpop.f32.mrb[0].mxu0
    %151 = vdwg.mxu0
    %152 = vmatprep.subr.bf16.mxu0 %v94
    %153 = vmatpush1.bf16.msra.mxu0 %v93
    %154 = vmatprep.subr.bf16.mxu0 %v98
    %155 = vmatpush1.bf16.msra.mxu0 %v97
    %156 = vmatprep.subr.bf16.mxu0 0
    %157 = vmatpush1.bf16.msra.mxu0 0
    %158 = vmatprep.subr.bf16.mxu0 0
    %159 = vmatpush1.bf16.msra.mxu0 0
    %160 = vmatprep.subr.bf16.mxu0 0
    %161 = vmatpush1.bf16.msra.mxu0 0
    %162 = vmatprep.subr.bf16.mxu0 0
    %163 = vmatpush1.bf16.msra.mxu0 0
    %164 = vmatprep.subr.bf16.mxu0 0
    %165 = vmatpush1.bf16.msra.mxu0 0
    %166 = vmatprep.subr.bf16.mxu0 0
    %167 = vmatpush1.bf16.msra.mxu0 0
    %168 = vmatprep.subr.bf16.mxu0 0
    %169 = vmatpush1.bf16.msra.mxu0 0
    %170 = vmatprep.subr.bf16.mxu0 0
    %171 = vmatpush1.bf16.msra.mxu0 0
    %172 = vmatprep.subr.bf16.mxu0 0
    %173 = vmatpush1.bf16.msra.mxu0 0
    %174 = vmatprep.subr.bf16.mxu0 0
    %175 = vmatpush1.bf16.msra.mxu0 0
    %176 = vmatprep.subr.bf16.mxu0 0
    %177 = vmatpush1.bf16.msra.mxu0 0
    %178 = vmatprep.subr.bf16.mxu0 0
    %179 = vmatpush1.bf16.msra.mxu0 0
    %180 = vmatprep.subr.bf16.mxu0 0
    %181 = vmatpush1.bf16.msra.mxu0 0
    %182 = vmatprep.subr.bf16.mxu0 0
    %183 = vmatpush1.bf16.msra.mxu0 0
    %184 = vmatprep.mubr.bf16.mxu0 0
    %185 = vmatmul.mubr.bf16.gmra.mrb[0].mxu0 %v109
    %v186 = vpop.f32.mrb[0].mxu0
    %v187 = vadd.f32 %v58, %v186
    %v188 = vpop.f32.mrb[0].mxu0
    %v189 = vadd.f32 %v62, %v188
    %v190 = vpop.f32.mrb[0].mxu0
    %v191 = vpop.f32.mrb[0].mxu0
    %192 = vdwg.mxu0
    %v193 = vmax.f32 %v146, 0.0
    %v194 = vmax.f32 %v148, 0.0
    %v195 = vmax.f32 %v187, 0.0
    %v196 = vmax.f32 %v189, 0.0
    %v197 = vpack.c.bf16 %v193, %v193
    %v198 = vpack.c.bf16 %v194, %v194
    %v199 = vpack.c.bf16 %v195, %v195
    %v200 = vpack.c.bf16 %v196, %v196
    %v201 = vld [vmem:[%s3] sm:$0xff]
    %v202 = vld [vmem:[%s3 + $0x8] sm:$0xff]
    %v203 = vld [vmem:[%s3 + $0x10] sm:$0xff]
    %v204 = vld [vmem:[%s3 + $0x18] sm:$0xff]
    %v205 = vld [vmem:[%s3 + $0x20] sm:$0xff]
    %v206 = vld [vmem:[%s3 + $0x28] sm:$0xff]
    %v207 = vld [vmem:[%s3 + $0x30] sm:$0xff]
    %v208 = vld [vmem:[%s3 + $0x38] sm:$0xff]
    %v209 = vld [vmem:[%s3 + $0x40] sm:$0xff]
    %v210 = vld [vmem:[%s3 + $0x48] sm:$0xff]
    %v211 = vld [vmem:[%s3 + $0x50] sm:$0xff]
    %v212 = vld [vmem:[%s3 + $0x58] sm:$0xff]
    %v213 = vld [vmem:[%s3 + $0x60] sm:$0xff]
    %v214 = vld [vmem:[%s3 + $0x68] sm:$0xff]
    %v215 = vld [vmem:[%s3 + $0x70] sm:$0xff]
    %v216 = vld [vmem:[%s3 + $0x78] sm:$0xff]
    %v217 = vld [vmem:[%s3 + $0x80] sm:$0xff]
    %v218 = vld [vmem:[%s3 + $0x88] sm:$0xff]
    %v219 = vld [vmem:[%s3 + $0x90] sm:$0xff]
    %v220 = vld [vmem:[%s3 + $0x98] sm:$0xff]
    %v221 = vld [vmem:[%s3 + $0xa0] sm:$0xff]
    %v222 = vld [vmem:[%s3 + $0xa8] sm:$0xff]
    %v223 = vld [vmem:[%s3 + $0xb0] sm:$0xff]
    %v224 = vld [vmem:[%s3 + $0xb8] sm:$0xff]
    %v225 = vld [vmem:[%s3 + $0xc0] sm:$0xff]
    %v226 = vld [vmem:[%s3 + $0xc8] sm:$0xff]
    %v227 = vld [vmem:[%s3 + $0xd0] sm:$0xff]
    %v228 = vld [vmem:[%s3 + $0xd8] sm:$0xff]
    %v229 = vld [vmem:[%s3 + $0xe0] sm:$0xff]
    %v230 = vld [vmem:[%s3 + $0xe8] sm:$0xff]
    %v231 = vld [vmem:[%s3 + $0xf0] sm:$0xff]
    %v232 = vld [vmem:[%s3 + $0xf8] sm:$0xff]
    %v233 = vld [vmem:[%s3 + $0x100] sm:$0xff]
    %v234 = vld [vmem:[%s3 + $0x108] sm:$0xff]
    %v235 = vld [vmem:[%s3 + $0x110] sm:$0xff]
    %v236 = vld [vmem:[%s3 + $0x118] sm:$0xff]
    %v237 = vld [vmem:[%s3 + $0x120] sm:$0xff]
    %v238 = vld [vmem:[%s3 + $0x128] sm:$0xff]
    %v239 = vld [vmem:[%s3 + $0x130] sm:$0xff]
    %v240 = vld [vmem:[%s3 + $0x138] sm:$0xff]
    %v241 = vld [vmem:[%s3 + $0x140] sm:$0xff]
    %v242 = vld [vmem:[%s3 + $0x148] sm:$0xff]
    %v243 = vld [vmem:[%s3 + $0x150] sm:$0xff]
    %v244 = vld [vmem:[%s3 + $0x158] sm:$0xff]
    %v245 = vld [vmem:[%s3 + $0x160] sm:$0xff]
    %v246 = vld [vmem:[%s3 + $0x168] sm:$0xff]
    %v247 = vld [vmem:[%s3 + $0x170] sm:$0xff]
    %v248 = vld [vmem:[%s3 + $0x178] sm:$0xff]
    %v249 = vld [vmem:[%s3 + $0x180] sm:$0xff]
    %v250 = vld [vmem:[%s3 + $0x188] sm:$0xff]
    %v251 = vld [vmem:[%s3 + $0x190] sm:$0xff]
    %v252 = vld [vmem:[%s3 + $0x198] sm:$0xff]
    %v253 = vld [vmem:[%s3 + $0x1a0] sm:$0xff]
    %v254 = vld [vmem:[%s3 + $0x1a8] sm:$0xff]
    %v255 = vld [vmem:[%s3 + $0x1b0] sm:$0xff]
    %v256 = vld [vmem:[%s3 + $0x1b8] sm:$0xff]
    %v257 = vld [vmem:[%s3 + $0x1c0] sm:$0xff]
    %v258 = vld [vmem:[%s3 + $0x1c8] sm:$0xff]
    %v259 = vld [vmem:[%s3 + $0x1d0] sm:$0xff]
    %v260 = vld [vmem:[%s3 + $0x1d8] sm:$0xff]
    %v261 = vld [vmem:[%s3 + $0x1e0] sm:$0xff]
    %v262 = vld [vmem:[%s3 + $0x1e8] sm:$0xff]
    %v263 = vld [vmem:[%s3 + $0x1f0] sm:$0xff]
    %v264 = vld [vmem:[%s3 + $0x1f8] sm:$0xff]
    %v265 = vld [vmem:[%s4] sm:$0x3]
    %v267 = vlaneseq
    %v268 = vshrl.u32 %v267, 7
    %v269 = vsub.s32 0, %v268
    %v270 = vrot.slane %v265, %v269
    %v271 = vlaneseq
    %v272 = vshrl.u32 %v271, 7
    %v273 = vsub.s32 1, %v272
    %v274 = vrot.slane %v265, %v273
    %v341 = vunpack.c.l.b16 %v201
    %v342 = vunpack.c.h.b16 %v201
    %v343 = vunpack.c.l.b16 %v202
    %v344 = vunpack.c.h.b16 %v202
    %v345 = vunpack.c.l.b16 %v203
    %v346 = vunpack.c.h.b16 %v203
    %v347 = vunpack.c.l.b16 %v204
    %v348 = vunpack.c.h.b16 %v204
    %v349 = vunpack.c.l.b16 %v205
    %v350 = vunpack.c.h.b16 %v205
    %v351 = vunpack.c.l.b16 %v206
    %v352 = vunpack.c.h.b16 %v206
    %v353 = vunpack.c.l.b16 %v207
    %v354 = vunpack.c.h.b16 %v207
    %v355 = vunpack.c.l.b16 %v208
    %v356 = vunpack.c.h.b16 %v208
    %v357 = vunpack.c.l.b16 %v209
    %v358 = vunpack.c.h.b16 %v209
    %v359 = vunpack.c.l.b16 %v210
    %v360 = vunpack.c.h.b16 %v210
    %v361 = vunpack.c.l.b16 %v211
    %v362 = vunpack.c.h.b16 %v211
    %v363 = vunpack.c.l.b16 %v212
    %v364 = vunpack.c.h.b16 %v212
    %v365 = vunpack.c.l.b16 %v213
    %v366 = vunpack.c.h.b16 %v213
    %v367 = vunpack.c.l.b16 %v214
    %v368 = vunpack.c.h.b16 %v214
    %v369 = vunpack.c.l.b16 %v215
    %v370 = vunpack.c.h.b16 %v215
    %v371 = vunpack.c.l.b16 %v216
    %v372 = vunpack.c.h.b16 %v216
    %v373 = vunpack.c.l.b16 %v217
    %v374 = vunpack.c.h.b16 %v217
    %v375 = vunpack.c.l.b16 %v218
    %v376 = vunpack.c.h.b16 %v218
    %v377 = vunpack.c.l.b16 %v219
    %v378 = vunpack.c.h.b16 %v219
    %v379 = vunpack.c.l.b16 %v220
    %v380 = vunpack.c.h.b16 %v220
    %v381 = vunpack.c.l.b16 %v221
    %v382 = vunpack.c.h.b16 %v221
    %v383 = vunpack.c.l.b16 %v222
    %v384 = vunpack.c.h.b16 %v222
    %v385 = vunpack.c.l.b16 %v223
    %v386 = vunpack.c.h.b16 %v223
    %v387 = vunpack.c.l.b16 %v224
    %v388 = vunpack.c.h.b16 %v224
    %v389 = vunpack.c.l.b16 %v225
    %v390 = vunpack.c.h.b16 %v225
    %v391 = vunpack.c.l.b16 %v226
    %v392 = vunpack.c.h.b16 %v226
    %v393 = vunpack.c.l.b16 %v227
    %v394 = vunpack.c.h.b16 %v227
    %v395 = vunpack.c.l.b16 %v228
    %v396 = vunpack.c.h.b16 %v228
    %v397 = vunpack.c.l.b16 %v229
    %v398 = vunpack.c.h.b16 %v229
    %v399 = vunpack.c.l.b16 %v230
    %v400 = vunpack.c.h.b16 %v230
    %v401 = vunpack.c.l.b16 %v231
    %v402 = vunpack.c.h.b16 %v231
    %v403 = vunpack.c.l.b16 %v232
    %v404 = vunpack.c.h.b16 %v232
    %v405 = vunpack.c.l.b16 %v233
    %v406 = vunpack.c.h.b16 %v233
    %v407 = vunpack.c.l.b16 %v234
    %v408 = vunpack.c.h.b16 %v234
    %v409 = vunpack.c.l.b16 %v235
    %v410 = vunpack.c.h.b16 %v235
    %v411 = vunpack.c.l.b16 %v236
    %v412 = vunpack.c.h.b16 %v236
    %v413 = vunpack.c.l.b16 %v237
    %v414 = vunpack.c.h.b16 %v237
    %v415 = vunpack.c.l.b16 %v238
    %v416 = vunpack.c.h.b16 %v238
    %v417 = vunpack.c.l.b16 %v239
    %v418 = vunpack.c.h.b16 %v239
    %v419 = vunpack.c.l.b16 %v240
    %v420 = vunpack.c.h.b16 %v240
    %v421 = vunpack.c.l.b16 %v241
    %v422 = vunpack.c.h.b16 %v241
    %v423 = vunpack.c.l.b16 %v242
    %v424 = vunpack.c.h.b16 %v242
    %v425 = vunpack.c.l.b16 %v243
    %v426 = vunpack.c.h.b16 %v243
    %v427 = vunpack.c.l.b16 %v244
    %v428 = vunpack.c.h.b16 %v244
    %v429 = vunpack.c.l.b16 %v245
    %v430 = vunpack.c.h.b16 %v245
    %v431 = vunpack.c.l.b16 %v246
    %v432 = vunpack.c.h.b16 %v246
    %v433 = vunpack.c.l.b16 %v247
    %v434 = vunpack.c.h.b16 %v247
    %v435 = vunpack.c.l.b16 %v248
    %v436 = vunpack.c.h.b16 %v248
    %v437 = vunpack.c.l.b16 %v249
    %v438 = vunpack.c.h.b16 %v249
    %v439 = vunpack.c.l.b16 %v250
    %v440 = vunpack.c.h.b16 %v250
    %v441 = vunpack.c.l.b16 %v251
    %v442 = vunpack.c.h.b16 %v251
    %v443 = vunpack.c.l.b16 %v252
    %v444 = vunpack.c.h.b16 %v252
    %v445 = vunpack.c.l.b16 %v253
    %v446 = vunpack.c.h.b16 %v253
    %v447 = vunpack.c.l.b16 %v254
    %v448 = vunpack.c.h.b16 %v254
    %v449 = vunpack.c.l.b16 %v255
    %v450 = vunpack.c.h.b16 %v255
    %v451 = vunpack.c.l.b16 %v256
    %v452 = vunpack.c.h.b16 %v256
    %v453 = vunpack.c.l.b16 %v257
    %v454 = vunpack.c.h.b16 %v257
    %v455 = vunpack.c.l.b16 %v258
    %v456 = vunpack.c.h.b16 %v258
    %v457 = vunpack.c.l.b16 %v259
    %v458 = vunpack.c.h.b16 %v259
    %v459 = vunpack.c.l.b16 %v260
    %v460 = vunpack.c.h.b16 %v260
    %v461 = vunpack.c.l.b16 %v261
    %v462 = vunpack.c.h.b16 %v261
    %v463 = vunpack.c.l.b16 %v262
    %v464 = vunpack.c.h.b16 %v262
    %v465 = vunpack.c.l.b16 %v263
    %v466 = vunpack.c.h.b16 %v263
    %v467 = vunpack.c.l.b16 %v264
    %v468 = vunpack.c.h.b16 %v264
    %v469 = vpack.c.b16 %v343, %v341
    %v470 = vpack.c.b16 %v344, %v342
    %v471 = vpack.c.b16 %v347, %v345
    %v472 = vpack.c.b16 %v348, %v346
    %v473 = vpack.c.b16 %v351, %v349
    %v474 = vpack.c.b16 %v352, %v350
    %v475 = vpack.c.b16 %v355, %v353
    %v476 = vpack.c.b16 %v356, %v354
    %v477 = vpack.c.b16 %v359, %v357
    %v478 = vpack.c.b16 %v360, %v358
    %v479 = vpack.c.b16 %v363, %v361
    %v480 = vpack.c.b16 %v364, %v362
    %v481 = vpack.c.b16 %v367, %v365
    %v482 = vpack.c.b16 %v368, %v366
    %v483 = vpack.c.b16 %v371, %v369
    %v484 = vpack.c.b16 %v372, %v370
    %v485 = vpack.c.b16 %v375, %v373
    %v486 = vpack.c.b16 %v376, %v374
    %v487 = vpack.c.b16 %v379, %v377
    %v488 = vpack.c.b16 %v380, %v378
    %v489 = vpack.c.b16 %v383, %v381
    %v490 = vpack.c.b16 %v384, %v382
    %v491 = vpack.c.b16 %v387, %v385
    %v492 = vpack.c.b16 %v388, %v386
    %v493 = vpack.c.b16 %v391, %v389
    %v494 = vpack.c.b16 %v392, %v390
    %v495 = vpack.c.b16 %v395, %v393
    %v496 = vpack.c.b16 %v396, %v394
    %v497 = vpack.c.b16 %v399, %v397
    %v498 = vpack.c.b16 %v400, %v398
    %v499 = vpack.c.b16 %v403, %v401
    %v500 = vpack.c.b16 %v404, %v402
    %v501 = vpack.c.b16 %v407, %v405
    %v502 = vpack.c.b16 %v408, %v406
    %v503 = vpack.c.b16 %v411, %v409
    %v504 = vpack.c.b16 %v412, %v410
    %v505 = vpack.c.b16 %v415, %v413
    %v506 = vpack.c.b16 %v416, %v414
    %v507 = vpack.c.b16 %v419, %v417
    %v508 = vpack.c.b16 %v420, %v418
    %v509 = vpack.c.b16 %v423, %v421
    %v510 = vpack.c.b16 %v424, %v422
    %v511 = vpack.c.b16 %v427, %v425
    %v512 = vpack.c.b16 %v428, %v426
    %v513 = vpack.c.b16 %v431, %v429
    %v514 = vpack.c.b16 %v432, %v430
    %v515 = vpack.c.b16 %v435, %v433
    %v516 = vpack.c.b16 %v436, %v434
    %v517 = vpack.c.b16 %v439, %v437
    %v518 = vpack.c.b16 %v440, %v438
    %v519 = vpack.c.b16 %v443, %v441
    %v520 = vpack.c.b16 %v444, %v442
    %v521 = vpack.c.b16 %v447, %v445
    %v522 = vpack.c.b16 %v448, %v446
    %v523 = vpack.c.b16 %v451, %v449
    %v524 = vpack.c.b16 %v452, %v450
    %v525 = vpack.c.b16 %v455, %v453
    %v526 = vpack.c.b16 %v456, %v454
    %v527 = vpack.c.b16 %v459, %v457
    %v528 = vpack.c.b16 %v460, %v458
    %v529 = vpack.c.b16 %v463, %v461
    %v530 = vpack.c.b16 %v464, %v462
    %v531 = vpack.c.b16 %v467, %v465
    %v532 = vpack.c.b16 %v468, %v466
    %597 = vmatprep.subr.bf16.mxu0 %v470
    %598 = vmatpush1.bf16.msra.mxu0 %v469
    %599 = vmatprep.subr.bf16.mxu0 %v472
    %600 = vmatpush1.bf16.msra.mxu0 %v471
    %601 = vmatprep.subr.bf16.mxu0 %v474
    %602 = vmatpush1.bf16.msra.mxu0 %v473
    %603 = vmatprep.subr.bf16.mxu0 %v476
    %604 = vmatpush1.bf16.msra.mxu0 %v475
    %605 = vmatprep.subr.bf16.mxu0 %v478
    %606 = vmatpush1.bf16.msra.mxu0 %v477
    %607 = vmatprep.subr.bf16.mxu0 %v480
    %608 = vmatpush1.bf16.msra.mxu0 %v479
    %609 = vmatprep.subr.bf16.mxu0 %v482
    %610 = vmatpush1.bf16.msra.mxu0 %v481
    %611 = vmatprep.subr.bf16.mxu0 %v484
    %612 = vmatpush1.bf16.msra.mxu0 %v483
    %613 = vmatprep.subr.bf16.mxu0 %v486
    %614 = vmatpush1.bf16.msra.mxu0 %v485
    %615 = vmatprep.subr.bf16.mxu0 %v488
    %616 = vmatpush1.bf16.msra.mxu0 %v487
    %617 = vmatprep.subr.bf16.mxu0 %v490
    %618 = vmatpush1.bf16.msra.mxu0 %v489
    %619 = vmatprep.subr.bf16.mxu0 %v492
    %620 = vmatpush1.bf16.msra.mxu0 %v491
    %621 = vmatprep.subr.bf16.mxu0 %v494
    %622 = vmatpush1.bf16.msra.mxu0 %v493
    %623 = vmatprep.subr.bf16.mxu0 %v496
    %624 = vmatpush1.bf16.msra.mxu0 %v495
    %625 = vmatprep.subr.bf16.mxu0 %v498
    %626 = vmatpush1.bf16.msra.mxu0 %v497
    %627 = vmatprep.subr.bf16.mxu0 %v500
    %628 = vmatpush1.bf16.msra.mxu0 %v499
    %629 = vmatprep.mubr.bf16.mxu0 %v198
    %630 = vmatmul.mubr.bf16.gmra.mrb[0].mxu0 %v197
    %v631 = vpop.f32.mrb[0].mxu0
    %v632 = vadd.f32 %v270, %v631
    %v633 = vpop.f32.mrb[0].mxu0
    %v634 = vadd.f32 %v274, %v633
    %v635 = vpop.f32.mrb[0].mxu0
    %v636 = vpop.f32.mrb[0].mxu0
    %637 = vdwg.mxu0
    %638 = vmatprep.subr.bf16.mxu0 %v502
    %639 = vmatpush1.bf16.msra.mxu0 %v501
    %640 = vmatprep.subr.bf16.mxu0 %v504
    %641 = vmatpush1.bf16.msra.mxu0 %v503
    %642 = vmatprep.subr.bf16.mxu0 %v506
    %643 = vmatpush1.bf16.msra.mxu0 %v505
    %644 = vmatprep.subr.bf16.mxu0 %v508
    %645 = vmatpush1.bf16.msra.mxu0 %v507
    %646 = vmatprep.subr.bf16.mxu0 %v510
    %647 = vmatpush1.bf16.msra.mxu0 %v509
    %648 = vmatprep.subr.bf16.mxu0 %v512
    %649 = vmatpush1.bf16.msra.mxu0 %v511
    %650 = vmatprep.subr.bf16.mxu0 %v514
    %651 = vmatpush1.bf16.msra.mxu0 %v513
    %652 = vmatprep.subr.bf16.mxu0 %v516
    %653 = vmatpush1.bf16.msra.mxu0 %v515
    %654 = vmatprep.subr.bf16.mxu0 %v518
    %655 = vmatpush1.bf16.msra.mxu0 %v517
    %656 = vmatprep.subr.bf16.mxu0 %v520
    %657 = vmatpush1.bf16.msra.mxu0 %v519
    %658 = vmatprep.subr.bf16.mxu0 %v522
    %659 = vmatpush1.bf16.msra.mxu0 %v521
    %660 = vmatprep.subr.bf16.mxu0 %v524
    %661 = vmatpush1.bf16.msra.mxu0 %v523
    %662 = vmatprep.subr.bf16.mxu0 %v526
    %663 = vmatpush1.bf16.msra.mxu0 %v525
    %664 = vmatprep.subr.bf16.mxu0 %v528
    %665 = vmatpush1.bf16.msra.mxu0 %v527
    %666 = vmatprep.subr.bf16.mxu0 %v530
    %667 = vmatpush1.bf16.msra.mxu0 %v529
    %668 = vmatprep.subr.bf16.mxu0 %v532
    %669 = vmatpush1.bf16.msra.mxu0 %v531
    %670 = vmatprep.mubr.bf16.mxu0 %v200
    %671 = vmatmul.mubr.bf16.gmra.mrb[0].mxu0 %v199
    %v672 = vpop.f32.mrb[0].mxu0
    %v673 = vadd.f32 %v632, %v672
    %v674 = vpop.f32.mrb[0].mxu0
    %v675 = vadd.f32 %v634, %v674
    %v676 = vpop.f32.mrb[0].mxu0
    %v677 = vpop.f32.mrb[0].mxu0
    %678 = vdwg.mxu0
    %v679 = vmax.f32 %v673, 0.0
    %v680 = vmax.f32 %v675, 0.0
    %v681 = vpack.c.bf16 %v679, %v679
    %v682 = vpack.c.bf16 %v680, %v680
    %v683 = vld [vmem:[%s5] sm:$0xf]
    %v684 = vld [vmem:[%s5 + $0x4] sm:$0xf]
    %v685 = vld [vmem:[%s5 + $0x8] sm:$0xf]
    %v686 = vld [vmem:[%s5 + $0xc] sm:$0xf]
    %v687 = vld [vmem:[%s5 + $0x10] sm:$0xf]
    %v688 = vld [vmem:[%s5 + $0x14] sm:$0xf]
    %v689 = vld [vmem:[%s5 + $0x18] sm:$0xf]
    %v690 = vld [vmem:[%s5 + $0x1c] sm:$0xf]
    %v691 = vld [vmem:[%s5 + $0x20] sm:$0xf]
    %v692 = vld [vmem:[%s5 + $0x24] sm:$0xf]
    %v693 = vld [vmem:[%s5 + $0x28] sm:$0xf]
    %v694 = vld [vmem:[%s5 + $0x2c] sm:$0xf]
    %v695 = vld [vmem:[%s5 + $0x30] sm:$0xf]
    %v696 = vld [vmem:[%s5 + $0x34] sm:$0xf]
    %v697 = vld [vmem:[%s5 + $0x38] sm:$0xf]
    %v698 = vld [vmem:[%s5 + $0x3c] sm:$0xf]
    %v699 = vld [vmem:[%s5 + $0x40] sm:$0xf]
    %v700 = vld [vmem:[%s5 + $0x44] sm:$0xf]
    %v701 = vld [vmem:[%s5 + $0x48] sm:$0xf]
    %v702 = vld [vmem:[%s5 + $0x4c] sm:$0xf]
    %v703 = vld [vmem:[%s5 + $0x50] sm:$0xf]
    %v704 = vld [vmem:[%s5 + $0x54] sm:$0xf]
    %v705 = vld [vmem:[%s5 + $0x58] sm:$0xf]
    %v706 = vld [vmem:[%s5 + $0x5c] sm:$0xf]
    %v707 = vld [vmem:[%s5 + $0x60] sm:$0xf]
    %v708 = vld [vmem:[%s5 + $0x64] sm:$0xf]
    %v709 = vld [vmem:[%s5 + $0x68] sm:$0xf]
    %v710 = vld [vmem:[%s5 + $0x6c] sm:$0xf]
    %v711 = vld [vmem:[%s5 + $0x70] sm:$0xf]
    %v712 = vld [vmem:[%s5 + $0x74] sm:$0xf]
    %v713 = vld [vmem:[%s5 + $0x78] sm:$0xf]
    %v714 = vld [vmem:[%s5 + $0x7c] sm:$0xf]
    %v715 = vld [vmem:[%s6] sm:$0x1]
    %v717 = vlaneseq
    %v718 = vshrl.u32 %v717, 7
    %v719 = vsub.s32 0, %v718
    %v720 = vrot.slane %v715, %v719
    %v754 = vunpack.c.l.b16 %v683
    %v755 = vunpack.c.l.b16 %v684
    %v756 = vunpack.c.l.b16 %v685
    %v757 = vunpack.c.l.b16 %v686
    %v758 = vunpack.c.l.b16 %v687
    %v759 = vunpack.c.l.b16 %v688
    %v760 = vunpack.c.l.b16 %v689
    %v761 = vunpack.c.l.b16 %v690
    %v762 = vunpack.c.l.b16 %v691
    %v763 = vunpack.c.l.b16 %v692
    %v764 = vunpack.c.l.b16 %v693
    %v765 = vunpack.c.l.b16 %v694
    %v766 = vunpack.c.l.b16 %v695
    %v767 = vunpack.c.l.b16 %v696
    %v768 = vunpack.c.l.b16 %v697
    %v769 = vunpack.c.l.b16 %v698
    %v770 = vunpack.c.l.b16 %v699
    %v771 = vunpack.c.l.b16 %v700
    %v772 = vunpack.c.l.b16 %v701
    %v773 = vunpack.c.l.b16 %v702
    %v774 = vunpack.c.l.b16 %v703
    %v775 = vunpack.c.l.b16 %v704
    %v776 = vunpack.c.l.b16 %v705
    %v777 = vunpack.c.l.b16 %v706
    %v778 = vunpack.c.l.b16 %v707
    %v779 = vunpack.c.l.b16 %v708
    %v780 = vunpack.c.l.b16 %v709
    %v781 = vunpack.c.l.b16 %v710
    %v782 = vunpack.c.l.b16 %v711
    %v783 = vunpack.c.l.b16 %v712
    %v784 = vunpack.c.l.b16 %v713
    %v785 = vunpack.c.l.b16 %v714
    %v786 = vpack.c.b16 %v755, %v754
    %v787 = vpack.c.b16 %v757, %v756
    %v788 = vpack.c.b16 %v759, %v758
    %v789 = vpack.c.b16 %v761, %v760
    %v790 = vpack.c.b16 %v763, %v762
    %v791 = vpack.c.b16 %v765, %v764
    %v792 = vpack.c.b16 %v767, %v766
    %v793 = vpack.c.b16 %v769, %v768
    %v794 = vpack.c.b16 %v771, %v770
    %v795 = vpack.c.b16 %v773, %v772
    %v796 = vpack.c.b16 %v775, %v774
    %v797 = vpack.c.b16 %v777, %v776
    %v798 = vpack.c.b16 %v779, %v778
    %v799 = vpack.c.b16 %v781, %v780
    %v800 = vpack.c.b16 %v783, %v782
    %v801 = vpack.c.b16 %v785, %v784
    %818 = vmatprep.subr.bf16.mxu0 0
    %819 = vmatpush1.bf16.msra.mxu0 %v786
    %820 = vmatprep.subr.bf16.mxu0 0
    %821 = vmatpush1.bf16.msra.mxu0 %v787
    %822 = vmatprep.subr.bf16.mxu0 0
    %823 = vmatpush1.bf16.msra.mxu0 %v788
    %824 = vmatprep.subr.bf16.mxu0 0
    %825 = vmatpush1.bf16.msra.mxu0 %v789
    %826 = vmatprep.subr.bf16.mxu0 0
    %827 = vmatpush1.bf16.msra.mxu0 %v790
    %828 = vmatprep.subr.bf16.mxu0 0
    %829 = vmatpush1.bf16.msra.mxu0 %v791
    %830 = vmatprep.subr.bf16.mxu0 0
    %831 = vmatpush1.bf16.msra.mxu0 %v792
    %832 = vmatprep.subr.bf16.mxu0 0
    %833 = vmatpush1.bf16.msra.mxu0 %v793
    %834 = vmatprep.subr.bf16.mxu0 0
    %835 = vmatpush1.bf16.msra.mxu0 %v794
    %836 = vmatprep.subr.bf16.mxu0 0
    %837 = vmatpush1.bf16.msra.mxu0 %v795
    %838 = vmatprep.subr.bf16.mxu0 0
    %839 = vmatpush1.bf16.msra.mxu0 %v796
    %840 = vmatprep.subr.bf16.mxu0 0
    %841 = vmatpush1.bf16.msra.mxu0 %v797
    %842 = vmatprep.subr.bf16.mxu0 0
    %843 = vmatpush1.bf16.msra.mxu0 %v798
    %844 = vmatprep.subr.bf16.mxu0 0
    %845 = vmatpush1.bf16.msra.mxu0 %v799
    %846 = vmatprep.subr.bf16.mxu0 0
    %847 = vmatpush1.bf16.msra.mxu0 %v800
    %848 = vmatprep.subr.bf16.mxu0 0
    %849 = vmatpush1.bf16.msra.mxu0 %v801
    %850 = vmatprep.mubr.bf16.mxu0 %v682
    %851 = vmatmul.mubr.bf16.gmra.mrb[0].mxu0 %v681
    %v852 = vpop.f32.mrb[0].mxu0
    %v853 = vadd.f32 %v720, %v852
    %v854 = vpop.f32.mrb[0].mxu0
    %v855 = vpop.f32.mrb[0].mxu0
    %v856 = vpop.f32.mrb[0].mxu0
    %857 = vdwg.mxu0
    %v858 = vmax.f32 %v853, 0.0
    %v859 = vld [vmem:[%s7] sm:$0x1]
    %v861 = vlaneseq
    %v862 = vshrl.u32 %v861, 7
    %v863 = vsub.s32 0, %v862
    %v864 = vrot.slane %v859, %v863
    %v866 = vmul.f32 %v858, %v864
    %867 = vadd.xlane.f32.xlu0 %v866
    %v868 = vpop.xlane.xlu0 %867
    %v869 = vld [vmem:[#allocation2] sm:$0x1]
    %871 = vset.pattern.permute.xlu0 0
    %872 = vperm.xlu0 %871, %v869
    %v873 = vpop.permute.xlu0 %872
    %v875 = vlaneseq
    %v876 = vshrl.u32 %v875, 7
    %v877 = vsub.s32 0, %v876
    %v878 = vrot.slane %v873, %v877
    %v879 = vadd.f32 %v868, %v878
    %v881 = vlaneseq
    %v882 = vand.u32 %v881, 127
    %v883 = vlaneseq
    %v884 = vshrl.u32 %v883, 7
    %v885 = vsub.s32 %v882, %v884
    %v886 = vrot.slane %v879, %v885
    %vm888 = vcmask 57344
    %889 = vst.msk [vmem:[#allocation3] sm:$0x1] %vm888, %v886
    // Predicated region
    $region38: #{critic_forward.1} parent=1 // pred_check
      _
    $region39: #{critic_forward.1} parent=1 // pred_check_branch
      %891 = sbr.rel (0) target = $region41
    $region40: #{critic_forward.1} parent=1 // pred_region
      %s893 = ssub.s32 16, 16
      %894 = vsyncadd [#allocation4], %s893
      %s896 = sshll.u32 [#allocation3], 4
      %s897 = int_to_ptr.vmem [resolvable:$true] %s896
      %899 = dma.vmem_to_hbm [thread:$0]  %s897, 16, %s9, [#allocation4]
    $region41: #{critic_forward.1} parent=1 // pred_fallthru
      _
    // Predicated region
    $region42: #{critic_forward.1} parent=1 // pred_check
      _
    $region43: #{critic_forward.1} parent=1 // pred_check_branch
      %901 = sbr.rel (0) target = $region45
    $region44: #{critic_forward.1} parent=1 // pred_region
      %902 = dma.done [#allocation4], 16
    $region45: #{critic_forward.1} parent=1 // pred_fallthru
      _
    %903 = vsyncpa [#allocation4], 1

</llo_original>
